<compile_context>
chip_gen: v7x
topology: tpu7x:2x2x1
jax: 0.10.0
libtpu: 0.0.40
codegen_flags: <defaults>
</compile_context>

<pallas_src>
import functools

import jax
import jax.numpy as jnp
from jax import lax
from jax.experimental import pallas as pl
from jax.experimental.pallas import tpu as pltpu


_EPS = 1e-12            # F.normalize default eps
_EPS_SQ = _EPS * _EPS   # guard on sum-of-squares so rsqrt == 1 / max(norm, eps)


# ----------------------------------------------------------------------------
# In-kernel helpers
# ----------------------------------------------------------------------------
def _student_rows(s_ref, wt_ref, inv_temp):
    """(Optionally projected,) L2-normalized, 1/T-scaled student rows, bf16."""
    s = s_ref[...]
    if wt_ref is not None:                      # static (trace-time) branch
        s = jnp.dot(s.astype(jnp.bfloat16), wt_ref[...],      # bf16 MXU, f32 acc
                    preferred_element_type=jnp.float32)
    else:
        s = s.astype(jnp.float32)
    ssq = jnp.sum(s * s, axis=1, keepdims=True)
    s = s * lax.rsqrt(jnp.maximum(ssq, _EPS_SQ)) * inv_temp   # fold 1/T here
    return s.astype(jnp.bfloat16)


def _diag_mask(tm, batch, row_start):
    """(tm, batch) bool, True where global row index == column index."""
    rows = row_start + lax.broadcasted_iota(jnp.int32, (tm, 1), 0)
    cols = lax.broadcasted_iota(jnp.int32, (tm, batch), 1)
    return cols == rows


# ----------------------------------------------------------------------------
# Kernels
# ----------------------------------------------------------------------------
def _ce_kernel(*refs, inv_temp, batch, tm, has_proj):
    """Cross-entropy path: mean_i [ logsumexp_j(sim_ij) - sim_ii ]."""
    if has_proj:
        s_ref, wt_ref, tT_ref, o_ref = refs
    else:
        s_ref, tT_ref, o_ref = refs
        wt_ref = None

    i = pl.program_id(0)
    row_start = i * tm

    s_n = _student_rows(s_ref, wt_ref, inv_temp)             # (tm, d) bf16, scaled
    sim = jnp.dot(s_n, tT_ref[...],                          # NN matmul, f32 acc
                  preferred_element_type=jnp.float32)        # (tm, batch)

    # Diagonal entries of this row tile, read straight out of sim (no extra
    # teacher load / normalize).
    diag = jnp.sum(jnp.where(_diag_mask(tm, batch, row_start), sim, 0.0),
                   axis=1, keepdims=True)                    # (tm, 1)

    m = jnp.max(sim, axis=1, keepdims=True)
    lse = jnp.log(jnp.sum(jnp.exp(sim - m), axis=1, keepdims=True)) + m
    partial = jnp.sum(lse - diag, axis=0, keepdims=True)     # (1, 1)

    @pl.when(i == 0)
    def _():
        o_ref[...] = jnp.zeros_like(o_ref)
    o_ref[...] += partial * (1.0 / batch)


def _domain_kernel(*refs, inv_temp, batch, tm, has_proj):
    """domain_labels path — faithful to the PyTorch module (incl. its +inf)."""
    if has_proj:
        s_ref, wt_ref, tT_ref, lrow_ref, lcol_ref, o_ref = refs
    else:
        s_ref, tT_ref, lrow_ref, lcol_ref, o_ref = refs
        wt_ref = None

    i = pl.program_id(0)
    row_start = i * tm

    s_n = _student_rows(s_ref, wt_ref, inv_temp)
    sim = jnp.dot(s_n, tT_ref[...], preferred_element_type=jnp.float32)  # (tm, B)

    # Single bool mask: same domain AND off-diagonal (diagonal always excluded).
    same = lrow_ref[...] == lcol_ref[...]                    # (tm, batch) bool
    pos = same & jnp.logical_not(_diag_mask(tm, batch, row_start))

    # PyTorch: -sum(log(exp(sim) * pos)) == -sum(where(pos, sim, -inf)):
    # identical values (sim where pos==1, log(0)=-inf where pos==0), one fewer
    # [tm,B] transcendental pass.  Like the reference module, this term is +inf.
    pos_cnt = jnp.maximum(jnp.sum(pos.astype(jnp.float32), axis=1, keepdims=True), 1.0)
    pos_loss = -jnp.sum(jnp.where(pos, sim, -jnp.inf), axis=1, keepdims=True) / pos_cnt

    # exp without max-shift, faithful to PyTorch (|sim| <= 1/temperature; for
    # temperature < ~1/88 this overflows to +inf exactly like the module).
    e = jnp.exp(sim)
    neg_loss = jnp.log(jnp.sum(jnp.where(pos, 0.0, e), axis=1, keepdims=True) + 1e-8)

    partial = jnp.sum(pos_loss + neg_loss, axis=0, keepdims=True)

    @pl.when(i == 0)
    def _():
        o_ref[...] = jnp.zeros_like(o_ref)
    o_ref[...] += partial * (1.0 / batch)


# ----------------------------------------------------------------------------
# Wrapper
# ----------------------------------------------------------------------------
def _pick_row_tile(b):
    for tm in (256, 128, 64, 32, 16, 8):
        if b % tm == 0:
            return tm
    return b  # b not a multiple of 8: single full-batch row block


def _physical_vmem_bytes():
    try:
        info = pltpu.get_tpu_info()
        v = getattr(info, "vmem_capacity_bytes", None)
        if v:
            return int(v)
    except Exception:
        pass
    return 64 * 2**20  # conservative default (v7x has the smallest VMEM)


def _vmem_estimate(tm, b, d_s, d_t, in_itemsize, has_proj, is_domain):
    est = 2 * tm * d_s * in_itemsize             # double-buffered student tile
    est += d_t * b * 2                           # resident normalized teacher (bf16)
    if has_proj:
        est += d_s * d_t * 2                     # resident projection weight (bf16)
    est += 3 * tm * max(d_s, d_t) * 4            # f32 student temporaries
    est += (5 if is_domain else 4) * tm * b * 4  # sim / exp / mask / iota tiles
    return est


def contrastive_loss(student, teacher, domain_labels=None, *,
                     temperature=0.5, projection_weight=None, row_tile=None):
    """JAX/Pallas equivalent of ContrastiveLoss.forward."""
    b, d_s = student.shape
    d_t = teacher.shape[-1]
    if b <= 1:
        return jnp.zeros((), dtype=jnp.float32)

    has_proj = d_s != d_t
    is_domain = domain_labels is not None
    inv_temp = float(1.0 / temperature)

    # One-time teacher prep (hoisted out of the grid loop): f32 L2-normalize ->
    # transpose -> bf16.  Fused by XLA into a single pass; the kernel reuses
    # this resident (d_t, b) MXU-ready operand for every row tile.
    t32 = teacher.astype(jnp.float32)
    t_ssq = jnp.sum(t32 * t32, axis=1, keepdims=True)
    t_nT = (t32 * lax.rsqrt(jnp.maximum(t_ssq, _EPS_SQ))).T.astype(jnp.bfloat16)

    wt = None
    if has_proj:
        # TODO(synk): the PyTorch module lazily creates + orthogonally-inits an
        # nn.Linear inside forward(); here the already-initialized weight must
        # be supplied by the caller (see orthogonal_weight below).
        assert projection_weight is not None and projection_weight.shape == (d_t, d_s)
        wt = projection_weight.T.astype(jnp.bfloat16)          # (d_s, d_t) resident, bf16

    # Row tile / VMEM budget (generation-aware).
    tm = row_tile if row_tile is not None else _pick_row_tile(b)
    assert b % tm == 0, "row_tile must evenly divide the batch"
    in_itemsize = student.dtype.itemsize
    est = _vmem_estimate(tm, b, d_s, d_t, in_itemsize, has_proj, is_domain)
    vmem_limit = None
    if est > 8 * 2**20:                      # default scoped limit: 16 MiB v5e / 32 MiB v6e+
        cap = int(0.75 * _physical_vmem_bytes())
        while est > cap and tm >= 16 and tm % 2 == 0 and b % (tm // 2) == 0:
            tm //= 2                         # shrink the row tile before spilling
            est = _vmem_estimate(tm, b, d_s, d_t, in_itemsize, has_proj, is_domain)
        # TODO(synk): for very large B add a column-tiled online-LSE grid axis
        # instead of keeping the full (d_t, B) teacher and (tm, B) sim resident.
        vmem_limit = int(min(cap, max(32 * 2**20, 2 * est)))
    grid_m = b // tm

    common = dict(inv_temp=inv_temp, batch=b, tm=tm, has_proj=has_proj)
    kernel = functools.partial(_domain_kernel if is_domain else _ce_kernel, **common)

    flops = 2 * b * b * d_t + 8 * b * (d_s + d_t)
    if has_proj:
        flops += 2 * b * d_s * d_t
    trans = (2 * b * b if is_domain else b * b) + 4 * b

    if is_domain:
        dl = jnp.asarray(domain_labels).reshape(b).astype(jnp.int32)
        lrow, lcol = dl.reshape(b, 1), dl.reshape(1, b)

    def _run(single_buffer_invariants):
        # Grid-invariant blocks (constant index_map) don't need double-buffering.
        inv_kwargs = dict(pipeline_mode=pl.Buffered(1)) if single_buffer_invariants else {}

        in_specs = [pl.BlockSpec((tm, d_s), lambda i: (i, 0))]       # student row tile
        args = [student]
        if has_proj:
            in_specs.append(pl.BlockSpec((d_s, d_t), lambda i: (0, 0), **inv_kwargs))
            args.append(wt)
        in_specs.append(pl.BlockSpec((d_t, b), lambda i: (0, 0), **inv_kwargs))
        args.append(t_nT)
        if is_domain:
            in_specs.append(pl.BlockSpec((tm, 1), lambda i: (i, 0)))  # row labels
            args.append(lrow)
            in_specs.append(pl.BlockSpec((1, b), lambda i: (0, 0), **inv_kwargs))
            args.append(lcol)

        bytes_accessed = sum(int(a.size) * int(a.dtype.itemsize) for a in args) + 4
        cost = pl.CostEstimate(flops=int(flops), transcendentals=int(trans),
                               bytes_accessed=int(bytes_accessed))

        return pl.pallas_call(
            kernel,
            out_shape=jax.ShapeDtypeStruct((1, 1), jnp.float32),
            grid=(grid_m,),
            in_specs=in_specs,
            out_specs=pl.BlockSpec((1, 1), lambda i: (0, 0)),
            compiler_params=pltpu.CompilerParams(
                dimension_semantics=("arbitrary",),   # row axis carries the accumulator
                vmem_limit_bytes=vmem_limit),
            cost_estimate=cost,
        )(*args)

    try:
        out = _run(True)
    except Exception:   # pl.Buffered(1) / pipeline_mode unsupported -> default buffering
        out = _run(False)
    return out[0, 0]


# ----------------------------------------------------------------------------
# Deterministic parameter init (mimics nn.init.orthogonal_ on a [out, in] weight)
# ----------------------------------------------------------------------------
def orthogonal_weight(key, out_dim, in_dim):
    rows, cols = (in_dim, out_dim) if out_dim < in_dim else (out_dim, in_dim)
    a = jax.random.normal(key, (rows, cols), dtype=jnp.float32)
    q, r = jnp.linalg.qr(a)
    q = q * jnp.sign(jnp.diagonal(r))[None, :]
    if out_dim < in_dim:
        q = q.T
    return q[:out_dim, :in_dim]


# ----------------------------------------------------------------------------
# Pure-JAX references (mirror the kernel's bf16-operand / f32-accumulate
# numerics; deviation from the exact f32 PyTorch path is O(1e-2) on sim).
# ----------------------------------------------------------------------------
def _bf16(x):
    return x.astype(jnp.bfloat16).astype(jnp.float32)


def _sim_ref(student, teacher, w, temperature):
    inv_t = 1.0 / temperature
    s = student.astype(jnp.float32)
    if w is not None:
        s = jnp.matmul(_bf16(s), _bf16(w.T.astype(jnp.float32)),
                       precision=lax.Precision.HIGHEST)
    s = s * lax.rsqrt(jnp.maximum(jnp.sum(s * s, axis=1, keepdims=True), _EPS_SQ)) * inv_t
    t = teacher.astype(jnp.float32)
    t = t * lax.rsqrt(jnp.maximum(jnp.sum(t * t, axis=1, keepdims=True), _EPS_SQ))
    return jnp.matmul(_bf16(s), _bf16(t).T, precision=lax.Precision.HIGHEST)


def _reference_ce(student, teacher, w, temperature):
    sim = _sim_ref(student, teacher, w, temperature)
    return jnp.mean(jax.scipy.special.logsumexp(sim, axis=1) - jnp.diagonal(sim))


def _reference_domain(student, teacher, w, labels, temperature):
    sim = _sim_ref(student, teacher, w, temperature)
    b = sim.shape[0]
    dsim = (labels[:, None] == labels[None, :]) & (~jnp.eye(b, dtype=bool))
    pos = dsim.astype(jnp.float32)
    neg = (~dsim).astype(jnp.float32)
    e = jnp.exp(sim)
    pos_cnt = jnp.maximum(pos.sum(1), 1.0)
    pos_loss = -jnp.sum(jnp.log(e * pos), axis=1) / pos_cnt
    neg_loss = jnp.log(jnp.sum(e * neg, axis=1) + 1e-8)
    return jnp.mean(pos_loss + neg_loss)


def _check(name, got, want, tol=1e-3):
    got = jnp.asarray(got, jnp.float32)
    want = jnp.asarray(want, jnp.float32)
    if bool(jnp.isinf(want)):
        assert bool(jnp.isinf(got)) and bool(jnp.sign(got) == jnp.sign(want)), (name, got, want)
    else:
        assert bool(jnp.allclose(got, want, atol=tol, rtol=tol)), (name, got, want)


if __name__ == "__main__":
    key = jax.random.PRNGKey(0)
    k_s, k_t, k_w, k_s2, k_t2 = jax.random.split(key, 5)

    # 1) cross-entropy path with projection (d_s != d_t), f32 inputs
    B, D_S, D_T = 8, 48, 32
    student = jax.random.normal(k_s, (B, D_S), dtype=jnp.float32)
    teacher = jax.random.normal(k_t, (B, D_T), dtype=jnp.float32)
    W = orthogonal_weight(k_w, D_T, D_S)   # nn.Linear(D_S, D_T, bias=False).weight

    loss = jax.block_until_ready(
        contrastive_loss(student, teacher, temperature=0.5, projection_weight=W))
    _check("ce+proj", loss, _reference_ce(student, teacher, W, 0.5), tol=3e-3)

    # 2) cross-entropy path, no projection, bf16 inputs, multi-tile row grid
    B2, D = 32, 128
    s2 = jax.random.normal(k_s2, (B2, D), dtype=jnp.bfloat16)
    t2 = jax.random.normal(k_t2, (B2, D), dtype=jnp.bfloat16)
    loss2 = jax.block_until_ready(
        contrastive_loss(s2, t2, temperature=0.1, row_tile=8))   # 4 row tiles
    _check("ce-bf16", loss2, _reference_ce(s2, t2, None, 0.1), tol=5e-3)

    # 3) domain-labels path (faithful to PyTorch: log(exp(sim)*pos) contains
    #    log(0) terms, so both the module and this kernel yield +inf)
    dl = jnp.array([0, 0, 1, 1, 0, 1, 0, 1], dtype=jnp.int32)
    loss3 = jax.block_until_ready(
        contrastive_loss(student, teacher, dl, temperature=0.5, projection_weight=W))
    _check("domain", loss3, _reference_domain(student, teacher, W, dl, 0.5))

    # 4) degenerate batch (<= 1) returns 0.0 like the module
    assert float(contrastive_loss(student[:1], teacher[:1], temperature=0.5,
                                  projection_weight=W)) == 0.0

    print("KERNEL_OK")
</pallas_src>

<mosaic_0001>
module attributes {stable_mosaic.version = 11 : i64} {
  func.func @_ce_kernel(%arg0: i32, %arg1: memref<8x48xf32, #tpu.memory_space<vmem>>, %arg2: memref<48x32xbf16, #tpu.memory_space<vmem>>, %arg3: memref<32x8xbf16, #tpu.memory_space<vmem>>, %arg4: memref<1x1xf32, #tpu.memory_space<vmem>>) attributes {dimension_semantics = [#tpu.dimension_semantics<arbitrary>], iteration_bounds = array<i64: 1>, scalar_prefetch = 0 : i64, scratch_operands = 0 : i64, tpu.core_type = #tpu.core_type<tc>, window_params = [{transform_indices = @transform_0, window_bounds = array<i64: 8, 48>}, {pipeline_mode = #tpu.pipeline_mode<synchronous>, transform_indices = @transform_1, window_bounds = array<i64: 48, 32>}, {pipeline_mode = #tpu.pipeline_mode<synchronous>, transform_indices = @transform_2, window_bounds = array<i64: 32, 8>}, {pipeline_mode = #tpu.pipeline_mode<synchronous>, transform_indices = @transform_3, window_bounds = array<i64: 1, 1>}]} {
    %c8_i32 = arith.constant 8 : i32
    %0 = arith.muli %arg0, %c8_i32 : i32
    %c0 = arith.constant 0 : index
    %c0_0 = arith.constant 0 : index
    %1 = vector.load %arg1[%c0, %c0_0] : memref<8x48xf32, #tpu.memory_space<vmem>>, vector<8x48xf32>
    %2 = arith.truncf %1 : vector<8x48xf32> to vector<8x48xbf16>
    %c0_1 = arith.constant 0 : index
    %c0_2 = arith.constant 0 : index
    %3 = vector.load %arg2[%c0_1, %c0_2] : memref<48x32xbf16, #tpu.memory_space<vmem>>, vector<48x32xbf16>
    %cst = arith.constant dense<0.000000e+00> : vector<8x32xf32>
    %4 = tpu.matmul %2, %3, %cst {dimension_numbers = #tpu.dot_dimension_numbers<[1], [0], [0], [1], [0, 0, 1, 1], [], []>} : vector<8x48xbf16>, vector<48x32xbf16>, vector<8x32xf32> -> vector<8x32xf32>
    %5 = arith.mulf %4, %4 : vector<8x32xf32>
    %cst_3 = arith.constant dense<0.000000e+00> : vector<8xf32>
    %6 = vector.multi_reduction <add>, %5, %cst_3 [1] : vector<8x32xf32> to vector<8xf32>
    %7 = vector.shape_cast %6 : vector<8xf32> to vector<8x1xf32>
    %cst_4 = arith.constant 1.000000e-24 : f32
    %8 = vector.broadcast %cst_4 : f32 to vector<8x1xf32>
    %9 = arith.maximumf %7, %8 : vector<8x1xf32>
    %10 = math.rsqrt %9 : vector<8x1xf32>
    %11 = vector.broadcast %10 : vector<8x1xf32> to vector<8x32xf32>
    %12 = arith.mulf %4, %11 : vector<8x32xf32>
    %cst_5 = arith.constant 2.000000e+00 : f32
    %13 = vector.broadcast %cst_5 : f32 to vector<8x32xf32>
    %14 = arith.mulf %12, %13 : vector<8x32xf32>
    %15 = arith.truncf %14 : vector<8x32xf32> to vector<8x32xbf16>
    %c0_6 = arith.constant 0 : index
    %c0_7 = arith.constant 0 : index
    %16 = vector.load %arg3[%c0_6, %c0_7] : memref<32x8xbf16, #tpu.memory_space<vmem>>, vector<32x8xbf16>
    %cst_8 = arith.constant dense<0.000000e+00> : vector<8x8xf32>
    %17 = tpu.matmul %15, %16, %cst_8 {dimension_numbers = #tpu.dot_dimension_numbers<[1], [0], [0], [1], [0, 0, 1, 1], [], []>} : vector<8x32xbf16>, vector<32x8xbf16>, vector<8x8xf32> -> vector<8x8xf32>
    %18 = tpu.iota {dimensions = array<i32: 0>} : vector<8x1xi32>
    %19 = vector.broadcast %0 : i32 to vector<8x1xi32>
    %20 = arith.addi %19, %18 : vector<8x1xi32>
    %21 = tpu.iota {dimensions = array<i32: 1>} : vector<8x8xi32>
    %22 = vector.broadcast %20 : vector<8x1xi32> to vector<8x8xi32>
    %23 = arith.cmpi eq, %21, %22 : vector<8x8xi32>
    %cst_9 = arith.constant 0.000000e+00 : f32
    %24 = vector.broadcast %cst_9 : f32 to vector<8x8xf32>
    %25 = arith.select %23, %17, %24 : vector<8x8xi1>, vector<8x8xf32>
    %cst_10 = arith.constant dense<0.000000e+00> : vector<8xf32>
    %26 = vector.multi_reduction <add>, %25, %cst_10 [1] : vector<8x8xf32> to vector<8xf32>
    %27 = vector.shape_cast %26 : vector<8xf32> to vector<8x1xf32>
    %cst_11 = arith.constant dense<0xFF800000> : vector<8xf32>
    %28 = vector.multi_reduction <maximumf>, %17, %cst_11 [1] : vector<8x8xf32> to vector<8xf32>
    %29 = vector.shape_cast %28 : vector<8xf32> to vector<8x1xf32>
    %30 = vector.broadcast %29 : vector<8x1xf32> to vector<8x8xf32>
    %31 = arith.subf %17, %30 : vector<8x8xf32>
    %32 = math.exp %31 : vector<8x8xf32>
    %cst_12 = arith.constant dense<0.000000e+00> : vector<8xf32>
    %33 = vector.multi_reduction <add>, %32, %cst_12 [1] : vector<8x8xf32> to vector<8xf32>
    %34 = vector.shape_cast %33 : vector<8xf32> to vector<8x1xf32>
    %35 = math.log %34 : vector<8x1xf32>
    %36 = arith.addf %35, %29 : vector<8x1xf32>
    %37 = arith.subf %36, %27 : vector<8x1xf32>
    %cst_13 = arith.constant dense<0.000000e+00> : vector<1xf32>
    %38 = vector.multi_reduction <add>, %37, %cst_13 [0] : vector<8x1xf32> to vector<1xf32>
    %39 = vector.shape_cast %38 : vector<1xf32> to vector<1x1xf32>
    %c0_i32 = arith.constant 0 : i32
    %40 = arith.cmpi eq, %arg0, %c0_i32 : i32
    %41 = arith.extui %40 : i1 to i32
    %c0_i32_14 = arith.constant 0 : i32
    %42 = arith.cmpi ne, %41, %c0_i32_14 : i32
    scf.if %42 {
      %cst_20 = arith.constant 0.000000e+00 : f32
      %48 = vector.broadcast %cst_20 : f32 to vector<1x1xf32>
      %c0_21 = arith.constant 0 : index
      %c0_22 = arith.constant 0 : index
      %49 = vector.load %arg4[%c0_21, %c0_22] : memref<1x1xf32, #tpu.memory_space<vmem>>, vector<1x1xf32>
      tpu.vector_store %arg4[%c0_21, %c0_22], %48 {strides = array<i32>} : memref<1x1xf32, #tpu.memory_space<vmem>>, vector<1x1xf32>,
    } else {
    }
    %c0_15 = arith.constant 0 : index
    %c0_16 = arith.constant 0 : index
    %43 = vector.load %arg4[%c0_15, %c0_16] : memref<1x1xf32, #tpu.memory_space<vmem>>, vector<1x1xf32>
    %cst_17 = arith.constant 1.250000e-01 : f32
    %44 = vector.broadcast %cst_17 : f32 to vector<1x1xf32>
    %45 = arith.mulf %39, %44 : vector<1x1xf32>
    %46 = arith.addf %43, %45 : vector<1x1xf32>
    %c0_18 = arith.constant 0 : index
    %c0_19 = arith.constant 0 : index
    %47 = vector.load %arg4[%c0_18, %c0_19] : memref<1x1xf32, #tpu.memory_space<vmem>>, vector<1x1xf32>
    tpu.vector_store %arg4[%c0_18, %c0_19], %46 {strides = array<i32>} : memref<1x1xf32, #tpu.memory_space<vmem>>, vector<1x1xf32>,
    return
  }
  func.func @transform_0(%arg0: i32) -> (i32, i32) {
    %c0_i32 = arith.constant 0 : i32
    %c0_i32_0 = arith.constant 0 : i32
    return %arg0, %c0_i32 : i32, i32
  }
  func.func @transform_1(%arg0: i32) -> (i32, i32) {
    %c0_i32 = arith.constant 0 : i32
    %c0_i32_0 = arith.constant 0 : i32
    %c0_i32_1 = arith.constant 0 : i32
    return %c0_i32, %c0_i32_0 : i32, i32
  }
  func.func @transform_2(%arg0: i32) -> (i32, i32) {
    %c0_i32 = arith.constant 0 : i32
    %c0_i32_0 = arith.constant 0 : i32
    %c0_i32_1 = arith.constant 0 : i32
    return %c0_i32, %c0_i32_0 : i32, i32
  }
  func.func @transform_3(%arg0: i32) -> (i32, i32) {
    %c0_i32 = arith.constant 0 : i32
    %c0_i32_0 = arith.constant 0 : i32
    %c0_i32_1 = arith.constant 0 : i32
    return %c0_i32, %c0_i32_0 : i32, i32
  }
}

module attributes {stable_mosaic.version = 11 : i64} {
  func.func @_ce_kernel(%arg0: i32, %arg1: memref<8x48xf32, #tpu.memory_space<vmem>>, %arg2: memref<48x32xbf16, #tpu.memory_space<vmem>>, %arg3: memref<32x8xbf16, #tpu.memory_space<vmem>>, %arg4: memref<1x1xf32, #tpu.memory_space<vmem>>) attributes {dimension_semantics = [#tpu.dimension_semantics<arbitrary>], iteration_bounds = array<i64: 1>, scalar_prefetch = 0 : i64, scratch_operands = 0 : i64, tpu.core_type = #tpu.core_type<tc>, window_params = [{transform_indices = @transform_0, window_bounds = array<i64: 8, 48>}, {pipeline_mode = #tpu.pipeline_mode<synchronous>, transform_indices = @transform_1, window_bounds = array<i64: 48, 32>}, {pipeline_mode = #tpu.pipeline_mode<synchronous>, transform_indices = @transform_2, window_bounds = array<i64: 32, 8>}, {pipeline_mode = #tpu.pipeline_mode<synchronous>, transform_indices = @transform_3, window_bounds = array<i64: 1, 1>}]} {
    %c8_i32 = arith.constant 8 : i32
    %0 = arith.muli %arg0, %c8_i32 : i32
    %c0 = arith.constant 0 : index
    %c0_0 = arith.constant 0 : index
    %1 = vector.load %arg1[%c0, %c0_0] : memref<8x48xf32, #tpu.memory_space<vmem>>, vector<8x48xf32>
    %2 = arith.truncf %1 : vector<8x48xf32> to vector<8x48xbf16>
    %c0_1 = arith.constant 0 : index
    %c0_2 = arith.constant 0 : index
    %3 = vector.load %arg2[%c0_1, %c0_2] : memref<48x32xbf16, #tpu.memory_space<vmem>>, vector<48x32xbf16>
    %cst = arith.constant dense<0.000000e+00> : vector<8x32xf32>
    %4 = tpu.matmul %2, %3, %cst {dimension_numbers = #tpu.dot_dimension_numbers<[1], [0], [0], [1], [0, 0, 1, 1], [], []>} : vector<8x48xbf16>, vector<48x32xbf16>, vector<8x32xf32> -> vector<8x32xf32>
    %5 = arith.mulf %4, %4 : vector<8x32xf32>
    %cst_3 = arith.constant dense<0.000000e+00> : vector<8xf32>
    %6 = vector.multi_reduction <add>, %5, %cst_3 [1] : vector<8x32xf32> to vector<8xf32>
    %7 = vector.shape_cast %6 : vector<8xf32> to vector<8x1xf32>
    %cst_4 = arith.constant 1.000000e-24 : f32
    %8 = vector.broadcast %cst_4 : f32 to vector<8x1xf32>
    %9 = arith.maximumf %7, %8 : vector<8x1xf32>
    %10 = math.rsqrt %9 : vector<8x1xf32>
    %11 = vector.broadcast %10 : vector<8x1xf32> to vector<8x32xf32>
    %12 = arith.mulf %4, %11 : vector<8x32xf32>
    %cst_5 = arith.constant 2.000000e+00 : f32
    %13 = vector.broadcast %cst_5 : f32 to vector<8x32xf32>
    %14 = arith.mulf %12, %13 : vector<8x32xf32>
    %15 = arith.truncf %14 : vector<8x32xf32> to vector<8x32xbf16>
    %c0_6 = arith.constant 0 : index
    %c0_7 = arith.constant 0 : index
    %16 = vector.load %arg3[%c0_6, %c0_7] : memref<32x8xbf16, #tpu.memory_space<vmem>>, vector<32x8xbf16>
    %cst_8 = arith.constant dense<0.000000e+00> : vector<8x8xf32>
    %17 = tpu.matmul %15, %16, %cst_8 {dimension_numbers = #tpu.dot_dimension_numbers<[1], [0], [0], [1], [0, 0, 1, 1], [], []>} : vector<8x32xbf16>, vector<32x8xbf16>, vector<8x8xf32> -> vector<8x8xf32>
    %18 = tpu.iota {dimensions = array<i32: 0>} : vector<8x1xi32>
    %19 = vector.broadcast %0 : i32 to vector<8x1xi32>
    %20 = arith.addi %19, %18 : vector<8x1xi32>
    %21 = tpu.iota {dimensions = array<i32: 1>} : vector<8x8xi32>
    %22 = vector.broadcast %20 : vector<8x1xi32> to vector<8x8xi32>
    %23 = arith.cmpi eq, %21, %22 : vector<8x8xi32>
    %cst_9 = arith.constant 0.000000e+00 : f32
    %24 = vector.broadcast %cst_9 : f32 to vector<8x8xf32>
    %25 = arith.select %23, %17, %24 : vector<8x8xi1>, vector<8x8xf32>
    %cst_10 = arith.constant dense<0.000000e+00> : vector<8xf32>
    %26 = vector.multi_reduction <add>, %25, %cst_10 [1] : vector<8x8xf32> to vector<8xf32>
    %27 = vector.shape_cast %26 : vector<8xf32> to vector<8x1xf32>
    %cst_11 = arith.constant dense<0xFF800000> : vector<8xf32>
    %28 = vector.multi_reduction <maximumf>, %17, %cst_11 [1] : vector<8x8xf32> to vector<8xf32>
    %29 = vector.shape_cast %28 : vector<8xf32> to vector<8x1xf32>
    %30 = vector.broadcast %29 : vector<8x1xf32> to vector<8x8xf32>
    %31 = arith.subf %17, %30 : vector<8x8xf32>
    %32 = math.exp %31 : vector<8x8xf32>
    %cst_12 = arith.constant dense<0.000000e+00> : vector<8xf32>
    %33 = vector.multi_reduction <add>, %32, %cst_12 [1] : vector<8x8xf32> to vector<8xf32>
    %34 = vector.shape_cast %33 : vector<8xf32> to vector<8x1xf32>
    %35 = math.log %34 : vector<8x1xf32>
    %36 = arith.addf %35, %29 : vector<8x1xf32>
    %37 = arith.subf %36, %27 : vector<8x1xf32>
    %cst_13 = arith.constant dense<0.000000e+00> : vector<1xf32>
    %38 = vector.multi_reduction <add>, %37, %cst_13 [0] : vector<8x1xf32> to vector<1xf32>
    %39 = vector.shape_cast %38 : vector<1xf32> to vector<1x1xf32>
    %c0_i32 = arith.constant 0 : i32
    %40 = arith.cmpi eq, %arg0, %c0_i32 : i32
    %41 = arith.extui %40 : i1 to i32
    %c0_i32_14 = arith.constant 0 : i32
    %42 = arith.cmpi ne, %41, %c0_i32_14 : i32
    scf.if %42 {
      %cst_20 = arith.constant 0.000000e+00 : f32
      %48 = vector.broadcast %cst_20 : f32 to vector<1x1xf32>
      %c0_21 = arith.constant 0 : index
      %c0_22 = arith.constant 0 : index
      %49 = vector.load %arg4[%c0_21, %c0_22] : memref<1x1xf32, #tpu.memory_space<vmem>>, vector<1x1xf32>
      tpu.vector_store %arg4[%c0_21, %c0_22], %48 {strides = array<i32>} : memref<1x1xf32, #tpu.memory_space<vmem>>, vector<1x1xf32>,
    } else {
    }
    %c0_15 = arith.constant 0 : index
    %c0_16 = arith.constant 0 : index
    %43 = vector.load %arg4[%c0_15, %c0_16] : memref<1x1xf32, #tpu.memory_space<vmem>>, vector<1x1xf32>
    %cst_17 = arith.constant 1.250000e-01 : f32
    %44 = vector.broadcast %cst_17 : f32 to vector<1x1xf32>
    %45 = arith.mulf %39, %44 : vector<1x1xf32>
    %46 = arith.addf %43, %45 : vector<1x1xf32>
    %c0_18 = arith.constant 0 : index
    %c0_19 = arith.constant 0 : index
    %47 = vector.load %arg4[%c0_18, %c0_19] : memref<1x1xf32, #tpu.memory_space<vmem>>, vector<1x1xf32>
    tpu.vector_store %arg4[%c0_18, %c0_19], %46 {strides = array<i32>} : memref<1x1xf32, #tpu.memory_space<vmem>>, vector<1x1xf32>,
    return
  }
  func.func @transform_0(%arg0: i32) -> (i32, i32) {
    %c0_i32 = arith.constant 0 : i32
    %c0_i32_0 = arith.constant 0 : i32
    return %arg0, %c0_i32 : i32, i32
  }
  func.func @transform_1(%arg0: i32) -> (i32, i32) {
    %c0_i32 = arith.constant 0 : i32
    %c0_i32_0 = arith.constant 0 : i32
    %c0_i32_1 = arith.constant 0 : i32
    return %c0_i32, %c0_i32_0 : i32, i32
  }
  func.func @transform_2(%arg0: i32) -> (i32, i32) {
    %c0_i32 = arith.constant 0 : i32
    %c0_i32_0 = arith.constant 0 : i32
    %c0_i32_1 = arith.constant 0 : i32
    return %c0_i32, %c0_i32_0 : i32, i32
  }
  func.func @transform_3(%arg0: i32) -> (i32, i32) {
    %c0_i32 = arith.constant 0 : i32
    %c0_i32_0 = arith.constant 0 : i32
    %c0_i32_1 = arith.constant 0 : i32
    return %c0_i32, %c0_i32_0 : i32, i32
  }
}

</mosaic_0001>

<llo_original>
// kernel: tpu_custom_call.1
$region0: #{tpu_custom_call.1}
  #allocation0 [shape = 'u32[]', space=smem, size = 0x4, offset = 0x4, fixed_abs, tag = 'smem constant byte address 0x4 - core index']
  #allocation1 [shape = 'u32[144,128]{1,0:T(1,128)}', space=vmem, size = 0x12000, scoped, tag = 'internal scratch']
  %s0 = inlined_call_operand.vmem [shape: f32[8,48], index: 0, kind: input, shape index: {}]
  %s1 = inlined_call_operand.vmem [shape: bf16[48,32], index: 1, kind: input, shape index: {}]
  %s2 = inlined_call_operand.vmem [shape: bf16[32,8], index: 2, kind: input, shape index: {}]
  %s3 = inlined_call_operand.hbm [shape: f32[1,1], index: 3, kind: output, shape index: {}]
  %s4 = sld [smem:[#allocation0]]
  $region26: #{tpu_custom_call.1} parent=0
    _
  %s6 = ssub.s32 1, %s4
  %s7 = scalar_select 0, %s6, %s4
  $region1: #{tpu_custom_call.1} parent=0
    #allocation2 [shape = 'u8[512]{0}', space=vmem, size = 0x400, scoped, tag = 'output window, operand 0, single buffered']
    #allocation3 [shape = 's32[1]{0}', space=sflag, size = 0x4, scoped, tag = 'scoped memory for tpu_custom_call.1']
    %8 = vsyncpa [#allocation3], 0
    // Predicated region
    $region2: #{tpu_custom_call.1} parent=1 // pred_check
      _
    $region3: #{tpu_custom_call.1} parent=1 // pred_check_branch
      %10 = sbr.rel (0) target = $region5
    $region4: #{tpu_custom_call.1} parent=1 // pred_region
      _
    $region5: #{tpu_custom_call.1} parent=1 // pred_fallthru
      _
    // Predicated region
    $region6: #{tpu_custom_call.1} parent=1 // pred_check
      _
    $region7: #{tpu_custom_call.1} parent=1 // pred_check_branch
      %12 = sbr.rel (0) target = $region9
    $region8: #{tpu_custom_call.1} parent=1 // pred_region
      _
    $region9: #{tpu_custom_call.1} parent=1 // pred_fallthru
      _
    // Predicated region
    $region10: #{tpu_custom_call.1} parent=1 // pred_check
      _
    $region11: #{tpu_custom_call.1} parent=1 // pred_check_branch
      %14 = sbr.rel (0) target = $region13
    $region12: #{tpu_custom_call.1} parent=1 // pred_region
      _
    $region13: #{tpu_custom_call.1} parent=1 // pred_fallthru
      _
    %s16 = smul.u32 0, 8
    %v17 = vld [vmem:[%s0] sm:$0xff]
    %v18 = vpack.c.bf16 %v17, %v17
    %v19 = vld [vmem:[%s1] sm:$0xf]
    %v20 = vld [vmem:[%s1 + $0x4] sm:$0xf]
    %v21 = vld [vmem:[%s1 + $0x8] sm:$0xf]
    %v22 = vld [vmem:[%s1 + $0xc] sm:$0xf]
    %v23 = vld [vmem:[%s1 + $0x10] sm:$0xf]
    %v24 = vld [vmem:[%s1 + $0x14] sm:$0xf]
    %v31 = vunpack.c.l.b16 %v19
    %v32 = vunpack.c.l.b16 %v20
    %v33 = vunpack.c.l.b16 %v21
    %v34 = vunpack.c.l.b16 %v22
    %v35 = vunpack.c.l.b16 %v23
    %v36 = vunpack.c.l.b16 %v24
    %v37 = vpack.c.b16 %v32, %v31
    %v38 = vpack.c.b16 %v34, %v33
    %v39 = vpack.c.b16 %v36, %v35
    %vm43 = vcmask 392192
    %v45 = vsel %vm43, %v18, 0
    %47 = vmatprep.subr.bf16.mxu0 0
    %48 = vmatpush1.bf16.msra.mxu0 %v37
    %49 = vmatprep.subr.bf16.mxu0 0
    %50 = vmatpush1.bf16.msra.mxu0 %v38
    %51 = vmatprep.subr.bf16.mxu0 0
    %52 = vmatpush1.bf16.msra.mxu0 %v39
    %53 = vmatprep.subr.bf16.mxu0 0
    %54 = vmatpush1.bf16.msra.mxu0 0
    %55 = vmatprep.subr.bf16.mxu0 0
    %56 = vmatpush1.bf16.msra.mxu0 0
    %57 = vmatprep.subr.bf16.mxu0 0
    %58 = vmatpush1.bf16.msra.mxu0 0
    %59 = vmatprep.subr.bf16.mxu0 0
    %60 = vmatpush1.bf16.msra.mxu0 0
    %61 = vmatprep.subr.bf16.mxu0 0
    %62 = vmatpush1.bf16.msra.mxu0 0
    %63 = vmatprep.subr.bf16.mxu0 0
    %64 = vmatpush1.bf16.msra.mxu0 0
    %65 = vmatprep.subr.bf16.mxu0 0
    %66 = vmatpush1.bf16.msra.mxu0 0
    %67 = vmatprep.subr.bf16.mxu0 0
    %68 = vmatpush1.bf16.msra.mxu0 0
    %69 = vmatprep.subr.bf16.mxu0 0
    %70 = vmatpush1.bf16.msra.mxu0 0
    %71 = vmatprep.subr.bf16.mxu0 0
    %72 = vmatpush1.bf16.msra.mxu0 0
    %73 = vmatprep.subr.bf16.mxu0 0
    %74 = vmatpush1.bf16.msra.mxu0 0
    %75 = vmatprep.subr.bf16.mxu0 0
    %76 = vmatpush1.bf16.msra.mxu0 0
    %77 = vmatprep.subr.bf16.mxu0 0
    %78 = vmatpush1.bf16.msra.mxu0 0
    %79 = vmatprep.mubr.bf16.mxu0 0
    %80 = vmatmul.mubr.bf16.gmra.mrb[0].mxu0 %v45
    %v81 = vpop.f32.mrb[0].mxu0
    %v82 = vadd.f32 0.0, %v81
    %v83 = vpop.f32.mrb[0].mxu0
    %v84 = vpop.f32.mrb[0].mxu0
    %v85 = vpop.f32.mrb[0].mxu0
    %86 = vdwg.mxu0
    %v87 = vmul.f32 %v82, %v82
    %vm88 = vcmask 261120
    %v89 = vsel %vm88, %v87, 0.0
    %90 = vadd.xlane.f32.xlu0 %v89
    %v91 = vpop.xlane.xlu0 %90
    %v92 = vmax.f32 %v91, 1e-24
    %v93 = vrsqrt.pop %v92
    %v94 = vmul.f32 %v82, %v93
    %v95 = vmul.f32 %v94, 2.0
    %v96 = vpack.c.bf16 %v95, %v95
    %v97 = vld [vmem:[%s2] sm:$0xf]
    %v98 = vld [vmem:[%s2 + $0x4] sm:$0xf]
    %v99 = vld [vmem:[%s2 + $0x8] sm:$0xf]
    %v100 = vld [vmem:[%s2 + $0xc] sm:$0xf]
    %v105 = vunpack.c.l.b16 %v97
    %v106 = vunpack.c.l.b16 %v98
    %v107 = vunpack.c.l.b16 %v99
    %v108 = vunpack.c.l.b16 %v100
    %v109 = vpack.c.b16 %v106, %v105
    %v110 = vpack.c.b16 %v108, %v107
    %v114 = vsel %vm88, %v96, 0
    %116 = vmatprep.subr.bf16.mxu0 0
    %117 = vmatpush1.bf16.msra.mxu0 %v109
    %118 = vmatprep.subr.bf16.mxu0 0
    %119 = vmatpush1.bf16.msra.mxu0 %v110
    %120 = vmatprep.subr.bf16.mxu0 0
    %121 = vmatpush1.bf16.msra.mxu0 0
    %122 = vmatprep.subr.bf16.mxu0 0
    %123 = vmatpush1.bf16.msra.mxu0 0
    %124 = vmatprep.subr.bf16.mxu0 0
    %125 = vmatpush1.bf16.msra.mxu0 0
    %126 = vmatprep.subr.bf16.mxu0 0
    %127 = vmatpush1.bf16.msra.mxu0 0
    %128 = vmatprep.subr.bf16.mxu0 0
    %129 = vmatpush1.bf16.msra.mxu0 0
    %130 = vmatprep.subr.bf16.mxu0 0
    %131 = vmatpush1.bf16.msra.mxu0 0
    %132 = vmatprep.subr.bf16.mxu0 0
    %133 = vmatpush1.bf16.msra.mxu0 0
    %134 = vmatprep.subr.bf16.mxu0 0
    %135 = vmatpush1.bf16.msra.mxu0 0
    %136 = vmatprep.subr.bf16.mxu0 0
    %137 = vmatpush1.bf16.msra.mxu0 0
    %138 = vmatprep.subr.bf16.mxu0 0
    %139 = vmatpush1.bf16.msra.mxu0 0
    %140 = vmatprep.subr.bf16.mxu0 0
    %141 = vmatpush1.bf16.msra.mxu0 0
    %142 = vmatprep.subr.bf16.mxu0 0
    %143 = vmatpush1.bf16.msra.mxu0 0
    %144 = vmatprep.subr.bf16.mxu0 0
    %145 = vmatpush1.bf16.msra.mxu0 0
    %146 = vmatprep.subr.bf16.mxu0 0
    %147 = vmatpush1.bf16.msra.mxu0 0
    %148 = vmatprep.mubr.bf16.mxu0 0
    %149 = vmatmul.mubr.bf16.gmra.mrb[0].mxu0 %v114
    %v150 = vpop.f32.mrb[0].mxu0
    %v151 = vadd.f32 0.0, %v150
    %v152 = vpop.f32.mrb[0].mxu0
    %v153 = vpop.f32.mrb[0].mxu0
    %v154 = vpop.f32.mrb[0].mxu0
    %155 = vdwg.mxu0
    %v156 = vlaneseq
    %v157 = vshrl.u32 %v156, 7
    %v158 = vstv %s16
    %v159 = vadd.s32 %v158, %v157
    %v160 = vlaneseq
    %v161 = vand.u32 %v160, 127
    %vm162 = vcmp.eq.s32.totalorder %v161, %v159
    %v163 = vsel %vm162, %v151, 0.0
    %vm164 = vcmask 64512
    %v165 = vsel %vm164, %v163, 0.0
    %166 = vadd.xlane.f32.xlu0 %v165
    %v167 = vpop.xlane.xlu0 %166
    %v168 = vsel %vm164, %v151, -inf
    %169 = vmax.xlane.f32.xlu0 %v168
    %v170 = vpop.xlane.xlu0 %169
    %v171 = vsub.f32 %v151, %v170
    %v172 = vmul.f32 %v171, 1.442695
    %v173 = vpow.pop %v172
    %v174 = vsel %vm164, %v173, 0.0
    %175 = vadd.xlane.f32.xlu0 %v174
    %v176 = vpop.xlane.xlu0 %175
    %v177 = vlog2.pop %v176
    %v178 = vmul.f32 %v177, 0.6931472
    %v179 = vadd.f32 %v178, %v170
    %v180 = vsub.f32 %v179, %v167
    %v181 = vrot.slane %v180, 4
    %v182 = vadd.f32 %v180, %v181
    %v183 = vrot.slane %v182, 2
    %v184 = vadd.f32 %v182, %v183
    %v185 = vrot.slane %v184, 1
    %v186 = vadd.f32 %v184, %v185
    %p187 = scmp.eq.s32.totalorder 0, 0
    // Predicated region
    $region14: #{tpu_custom_call.1} parent=1 // pred_check
      %p188 = pneg %p187
    $region15: #{tpu_custom_call.1} parent=1 // pred_check_branch
      %190 = sbr.rel (%p188) target = $region17
    $region16: #{tpu_custom_call.1} parent=1 // pred_region
      %vm191 = vcmask 0
      %192 = vst.msk [vmem:[#allocation2] sm:$0x1] %vm191, 0.0
    $region17: #{tpu_custom_call.1} parent=1 // pred_fallthru
      _
    %v193 = vld [vmem:[#allocation2] sm:$0x1]
    %v194 = vmul.f32 %v186, 0.125
    %v195 = vadd.f32 %v193, %v194
    %vm196 = vcmask 0
    %197 = vst.msk [vmem:[#allocation2] sm:$0x1] %vm196, %v195
    // Predicated region
    $region18: #{tpu_custom_call.1} parent=1 // pred_check
      _
    $region19: #{tpu_custom_call.1} parent=1 // pred_check_branch
      %199 = sbr.rel (0) target = $region21
    $region20: #{tpu_custom_call.1} parent=1 // pred_region
      %s201 = ssub.s32 16, 16
      %202 = vsyncadd [#allocation3], %s201
      %s204 = sshll.u32 [#allocation2], 4
      %s205 = int_to_ptr.vmem [resolvable:$true] %s204
      %207 = dma.vmem_to_hbm [thread:$0]  %s205, 16, %s3, [#allocation3]
    $region21: #{tpu_custom_call.1} parent=1 // pred_fallthru
      _
    // Predicated region
    $region22: #{tpu_custom_call.1} parent=1 // pred_check
      _
    $region23: #{tpu_custom_call.1} parent=1 // pred_check_branch
      %209 = sbr.rel (0) target = $region25
    $region24: #{tpu_custom_call.1} parent=1 // pred_region
      %210 = dma.done [#allocation3], 16
    $region25: #{tpu_custom_call.1} parent=1 // pred_fallthru
      _
    %211 = vsyncpa [#allocation3], 1

// kernel: tpu_custom_call.1
$region0: #{tpu_custom_call.1}
  #allocation0 [shape = 'u32[]', space=smem, size = 0x4, offset = 0x4, fixed_abs, tag = 'smem constant byte address 0x4 - core index']
  #allocation1 [shape = 'u32[144,128]{1,0:T(1,128)}', space=vmem, size = 0x12000, scoped, tag = 'internal scratch']
  %s0 = inlined_call_operand.vmem [shape: f32[8,48], index: 0, kind: input, shape index: {}]
  %s1 = inlined_call_operand.vmem [shape: bf16[48,32], index: 1, kind: input, shape index: {}]
  %s2 = inlined_call_operand.vmem [shape: bf16[32,8], index: 2, kind: input, shape index: {}]
  %s3 = inlined_call_operand.hbm [shape: f32[1,1], index: 3, kind: output, shape index: {}]
  %s4 = sld [smem:[#allocation0]]
  $region26: #{tpu_custom_call.1} parent=0
    _
  %s6 = ssub.s32 1, %s4
  %s7 = scalar_select 0, %s6, %s4
  $region1: #{tpu_custom_call.1} parent=0
    #allocation2 [shape = 'u8[512]{0}', space=vmem, size = 0x400, scoped, tag = 'output window, operand 0, single buffered']
    #allocation3 [shape = 's32[1]{0}', space=sflag, size = 0x4, scoped, tag = 'scoped memory for tpu_custom_call.1']
    %8 = vsyncpa [#allocation3], 0
    // Predicated region
    $region2: #{tpu_custom_call.1} parent=1 // pred_check
      _
    $region3: #{tpu_custom_call.1} parent=1 // pred_check_branch
      %10 = sbr.rel (0) target = $region5
    $region4: #{tpu_custom_call.1} parent=1 // pred_region
      _
    $region5: #{tpu_custom_call.1} parent=1 // pred_fallthru
      _
    // Predicated region
    $region6: #{tpu_custom_call.1} parent=1 // pred_check
      _
    $region7: #{tpu_custom_call.1} parent=1 // pred_check_branch
      %12 = sbr.rel (0) target = $region9
    $region8: #{tpu_custom_call.1} parent=1 // pred_region
      _
    $region9: #{tpu_custom_call.1} parent=1 // pred_fallthru
      _
    // Predicated region
    $region10: #{tpu_custom_call.1} parent=1 // pred_check
      _
    $region11: #{tpu_custom_call.1} parent=1 // pred_check_branch
      %14 = sbr.rel (0) target = $region13
    $region12: #{tpu_custom_call.1} parent=1 // pred_region
      _
    $region13: #{tpu_custom_call.1} parent=1 // pred_fallthru
      _
    %s16 = smul.u32 0, 8
    %v17 = vld [vmem:[%s0] sm:$0xff]
    %v18 = vpack.c.bf16 %v17, %v17
    %v19 = vld [vmem:[%s1] sm:$0xf]
    %v20 = vld [vmem:[%s1 + $0x4] sm:$0xf]
    %v21 = vld [vmem:[%s1 + $0x8] sm:$0xf]
    %v22 = vld [vmem:[%s1 + $0xc] sm:$0xf]
    %v23 = vld [vmem:[%s1 + $0x10] sm:$0xf]
    %v24 = vld [vmem:[%s1 + $0x14] sm:$0xf]
    %v31 = vunpack.c.l.b16 %v19
    %v32 = vunpack.c.l.b16 %v20
    %v33 = vunpack.c.l.b16 %v21
    %v34 = vunpack.c.l.b16 %v22
    %v35 = vunpack.c.l.b16 %v23
    %v36 = vunpack.c.l.b16 %v24
    %v37 = vpack.c.b16 %v32, %v31
    %v38 = vpack.c.b16 %v34, %v33
    %v39 = vpack.c.b16 %v36, %v35
    %vm43 = vcmask 392192
    %v45 = vsel %vm43, %v18, 0
    %47 = vmatprep.subr.bf16.mxu0 0
    %48 = vmatpush1.bf16.msra.mxu0 %v37
    %49 = vmatprep.subr.bf16.mxu0 0
    %50 = vmatpush1.bf16.msra.mxu0 %v38
    %51 = vmatprep.subr.bf16.mxu0 0
    %52 = vmatpush1.bf16.msra.mxu0 %v39
    %53 = vmatprep.subr.bf16.mxu0 0
    %54 = vmatpush1.bf16.msra.mxu0 0
    %55 = vmatprep.subr.bf16.mxu0 0
    %56 = vmatpush1.bf16.msra.mxu0 0
    %57 = vmatprep.subr.bf16.mxu0 0
    %58 = vmatpush1.bf16.msra.mxu0 0
    %59 = vmatprep.subr.bf16.mxu0 0
    %60 = vmatpush1.bf16.msra.mxu0 0
    %61 = vmatprep.subr.bf16.mxu0 0
    %62 = vmatpush1.bf16.msra.mxu0 0
    %63 = vmatprep.subr.bf16.mxu0 0
    %64 = vmatpush1.bf16.msra.mxu0 0
    %65 = vmatprep.subr.bf16.mxu0 0
    %66 = vmatpush1.bf16.msra.mxu0 0
    %67 = vmatprep.subr.bf16.mxu0 0
    %68 = vmatpush1.bf16.msra.mxu0 0
    %69 = vmatprep.subr.bf16.mxu0 0
    %70 = vmatpush1.bf16.msra.mxu0 0
    %71 = vmatprep.subr.bf16.mxu0 0
    %72 = vmatpush1.bf16.msra.mxu0 0
    %73 = vmatprep.subr.bf16.mxu0 0
    %74 = vmatpush1.bf16.msra.mxu0 0
    %75 = vmatprep.subr.bf16.mxu0 0
    %76 = vmatpush1.bf16.msra.mxu0 0
    %77 = vmatprep.subr.bf16.mxu0 0
    %78 = vmatpush1.bf16.msra.mxu0 0
    %79 = vmatprep.mubr.bf16.mxu0 0
    %80 = vmatmul.mubr.bf16.gmra.mrb[0].mxu0 %v45
    %v81 = vpop.f32.mrb[0].mxu0
    %v82 = vadd.f32 0.0, %v81
    %v83 = vpop.f32.mrb[0].mxu0
    %v84 = vpop.f32.mrb[0].mxu0
    %v85 = vpop.f32.mrb[0].mxu0
    %86 = vdwg.mxu0
    %v87 = vmul.f32 %v82, %v82
    %vm88 = vcmask 261120
    %v89 = vsel %vm88, %v87, 0.0
    %90 = vadd.xlane.f32.xlu0 %v89
    %v91 = vpop.xlane.xlu0 %90
    %v92 = vmax.f32 %v91, 1e-24
    %v93 = vrsqrt.pop %v92
    %v94 = vmul.f32 %v82, %v93
    %v95 = vmul.f32 %v94, 2.0
    %v96 = vpack.c.bf16 %v95, %v95
    %v97 = vld [vmem:[%s2] sm:$0xf]
    %v98 = vld [vmem:[%s2 + $0x4] sm:$0xf]
    %v99 = vld [vmem:[%s2 + $0x8] sm:$0xf]
    %v100 = vld [vmem:[%s2 + $0xc] sm:$0xf]
    %v105 = vunpack.c.l.b16 %v97
    %v106 = vunpack.c.l.b16 %v98
    %v107 = vunpack.c.l.b16 %v99
    %v108 = vunpack.c.l.b16 %v100
    %v109 = vpack.c.b16 %v106, %v105
    %v110 = vpack.c.b16 %v108, %v107
    %v114 = vsel %vm88, %v96, 0
    %116 = vmatprep.subr.bf16.mxu0 0
    %117 = vmatpush1.bf16.msra.mxu0 %v109
    %118 = vmatprep.subr.bf16.mxu0 0
    %119 = vmatpush1.bf16.msra.mxu0 %v110
    %120 = vmatprep.subr.bf16.mxu0 0
    %121 = vmatpush1.bf16.msra.mxu0 0
    %122 = vmatprep.subr.bf16.mxu0 0
    %123 = vmatpush1.bf16.msra.mxu0 0
    %124 = vmatprep.subr.bf16.mxu0 0
    %125 = vmatpush1.bf16.msra.mxu0 0
    %126 = vmatprep.subr.bf16.mxu0 0
    %127 = vmatpush1.bf16.msra.mxu0 0
    %128 = vmatprep.subr.bf16.mxu0 0
    %129 = vmatpush1.bf16.msra.mxu0 0
    %130 = vmatprep.subr.bf16.mxu0 0
    %131 = vmatpush1.bf16.msra.mxu0 0
    %132 = vmatprep.subr.bf16.mxu0 0
    %133 = vmatpush1.bf16.msra.mxu0 0
    %134 = vmatprep.subr.bf16.mxu0 0
    %135 = vmatpush1.bf16.msra.mxu0 0
    %136 = vmatprep.subr.bf16.mxu0 0
    %137 = vmatpush1.bf16.msra.mxu0 0
    %138 = vmatprep.subr.bf16.mxu0 0
    %139 = vmatpush1.bf16.msra.mxu0 0
    %140 = vmatprep.subr.bf16.mxu0 0
    %141 = vmatpush1.bf16.msra.mxu0 0
    %142 = vmatprep.subr.bf16.mxu0 0
    %143 = vmatpush1.bf16.msra.mxu0 0
    %144 = vmatprep.subr.bf16.mxu0 0
    %145 = vmatpush1.bf16.msra.mxu0 0
    %146 = vmatprep.subr.bf16.mxu0 0
    %147 = vmatpush1.bf16.msra.mxu0 0
    %148 = vmatprep.mubr.bf16.mxu0 0
    %149 = vmatmul.mubr.bf16.gmra.mrb[0].mxu0 %v114
    %v150 = vpop.f32.mrb[0].mxu0
    %v151 = vadd.f32 0.0, %v150
    %v152 = vpop.f32.mrb[0].mxu0
    %v153 = vpop.f32.mrb[0].mxu0
    %v154 = vpop.f32.mrb[0].mxu0
    %155 = vdwg.mxu0
    %v156 = vlaneseq
    %v157 = vshrl.u32 %v156, 7
    %v158 = vstv %s16
    %v159 = vadd.s32 %v158, %v157
    %v160 = vlaneseq
    %v161 = vand.u32 %v160, 127
    %vm162 = vcmp.eq.s32.totalorder %v161, %v159
    %v163 = vsel %vm162, %v151, 0.0
    %vm164 = vcmask 64512
    %v165 = vsel %vm164, %v163, 0.0
    %166 = vadd.xlane.f32.xlu0 %v165
    %v167 = vpop.xlane.xlu0 %166
    %v168 = vsel %vm164, %v151, -inf
    %169 = vmax.xlane.f32.xlu0 %v168
    %v170 = vpop.xlane.xlu0 %169
    %v171 = vsub.f32 %v151, %v170
    %v172 = vmul.f32 %v171, 1.442695
    %v173 = vpow.pop %v172
    %v174 = vsel %vm164, %v173, 0.0
    %175 = vadd.xlane.f32.xlu0 %v174
    %v176 = vpop.xlane.xlu0 %175
    %v177 = vlog2.pop %v176
    %v178 = vmul.f32 %v177, 0.6931472
    %v179 = vadd.f32 %v178, %v170
    %v180 = vsub.f32 %v179, %v167
    %v181 = vrot.slane %v180, 4
    %v182 = vadd.f32 %v180, %v181
    %v183 = vrot.slane %v182, 2
    %v184 = vadd.f32 %v182, %v183
    %v185 = vrot.slane %v184, 1
    %v186 = vadd.f32 %v184, %v185
    %p187 = scmp.eq.s32.totalorder 0, 0
    // Predicated region
    $region14: #{tpu_custom_call.1} parent=1 // pred_check
      %p188 = pneg %p187
    $region15: #{tpu_custom_call.1} parent=1 // pred_check_branch
      %190 = sbr.rel (%p188) target = $region17
    $region16: #{tpu_custom_call.1} parent=1 // pred_region
      %vm191 = vcmask 0
      %192 = vst.msk [vmem:[#allocation2] sm:$0x1] %vm191, 0.0
    $region17: #{tpu_custom_call.1} parent=1 // pred_fallthru
      _
    %v193 = vld [vmem:[#allocation2] sm:$0x1]
    %v194 = vmul.f32 %v186, 0.125
    %v195 = vadd.f32 %v193, %v194
    %vm196 = vcmask 0
    %197 = vst.msk [vmem:[#allocation2] sm:$0x1] %vm196, %v195
    // Predicated region
    $region18: #{tpu_custom_call.1} parent=1 // pred_check
      _
    $region19: #{tpu_custom_call.1} parent=1 // pred_check_branch
      %199 = sbr.rel (0) target = $region21
    $region20: #{tpu_custom_call.1} parent=1 // pred_region
      %s201 = ssub.s32 16, 16
      %202 = vsyncadd [#allocation3], %s201
      %s204 = sshll.u32 [#allocation2], 4
      %s205 = int_to_ptr.vmem [resolvable:$true] %s204
      %207 = dma.vmem_to_hbm [thread:$0]  %s205, 16, %s3, [#allocation3]
    $region21: #{tpu_custom_call.1} parent=1 // pred_fallthru
      _
    // Predicated region
    $region22: #{tpu_custom_call.1} parent=1 // pred_check
      _
    $region23: #{tpu_custom_call.1} parent=1 // pred_check_branch
      %209 = sbr.rel (0) target = $region25
    $region24: #{tpu_custom_call.1} parent=1 // pred_region
      %210 = dma.done [#allocation3], 16
    $region25: #{tpu_custom_call.1} parent=1 // pred_fallthru
      _
    %211 = vsyncpa [#allocation3], 1

</llo_original>
